<compile_context>
chip_gen: v7x
topology: tpu7x:2x2x1
jax: 0.10.0
libtpu: 0.0.40
codegen_flags: <defaults>
</compile_context>

<pallas_src>
import functools

import jax
import jax.numpy as jnp
from jax.experimental import pallas as pl
from jax.experimental.pallas import tpu as pltpu

EXPANSION = 4


# ------------------------------ small helpers ------------------------------ #
def _round_up(x, m):
    return ((x + m - 1) // m) * m


@functools.lru_cache(maxsize=None)
def _vmem_cap_bytes():
    try:
        return int(getattr(pltpu.get_tpu_info(), "vmem_capacity_bytes",
                           128 * 1024 * 1024))
    except Exception:
        return 128 * 1024 * 1024


@functools.lru_cache(maxsize=None)
def _vmem_limit_bytes():
    # Raise the scoped-VMEM limit above the 16/32 MiB defaults so real ResNet
    # widths fit, leaving headroom (v5e/v6e: ~90 of 128 MiB; v7x: ~45 of 64).
    return max(32 * 1024 * 1024, int(_vmem_cap_bytes() * 0.7))


def _pick_tm(m, itemsize=4):
    # v5e/v6e (128 MiB VMEM): 1024-row tiles in either dtype; v7x (64 MiB):
    # 512 for f32, 1024 only for bf16 (per perf review).
    big = (itemsize <= 2) or (_vmem_cap_bytes() >= 96 * 1024 * 1024)
    tmax = 1024 if big else 512
    return tmax if m >= tmax else _round_up(m, 8)


def _pick_tcout(cout):
    # Lane-dense Cout tiles (multiples of 128) whenever the layer width allows;
    # tiny toy widths (< 128, e.g. the demo's conv3) fall back to the full dim.
    for t in (256, 128):
        if cout % t == 0:
            return t
    return cout


def _compiler_params(num_axes, semantics=None):
    return pltpu.CompilerParams(
        dimension_semantics=semantics or ("parallel",) * num_axes,
        vmem_limit_bytes=_vmem_limit_bytes())


@functools.lru_cache(maxsize=None)
def _buffered_supported():
    # Probe pipeline_mode=pl.Buffered(1) so grid-invariant weight/bias blocks
    # can be single-buffered (halves their VMEM footprint); fall back cleanly
    # if this JAX build rejects it.
    if not hasattr(pl, "Buffered"):
        return False
    try:
        def _k(a_ref, o_ref):
            o_ref[...] = a_ref[...] + 1.0

        fn = pl.pallas_call(
            _k,
            out_shape=jax.ShapeDtypeStruct((8, 128), jnp.float32),
            grid=(2,),
            in_specs=[pl.BlockSpec((8, 128), lambda i: (0, 0),
                                   pipeline_mode=pl.Buffered(1))],
            out_specs=pl.BlockSpec((8, 128), lambda i: (0, 0)),
        )
        jax.block_until_ready(fn(jnp.zeros((8, 128), jnp.float32)))
        return True
    except Exception:
        return False


def _weight_spec(block_shape, index_map, grid_invariant):
    if grid_invariant and _buffered_supported():
        return pl.BlockSpec(block_shape, index_map, pipeline_mode=pl.Buffered(1))
    return pl.BlockSpec(block_shape, index_map)


# ----------------------------- Pallas kernels ------------------------------ #
def _mm_bias_act_kernel(x_ref, w_ref, b_ref, o_ref, *, apply_relu):
    # 1x1 conv as matmul; BN scale is pre-folded into w, so only a bias add.
    y = jnp.dot(x_ref[...], w_ref[...], preferred_element_type=jnp.float32)
    y = y + b_ref[...]
    if apply_relu:
        y = jnp.maximum(y, 0.0)
    o_ref[...] = y.astype(o_ref.dtype)


def _mm_bias_add_relu_kernel(x_ref, r_ref, w_ref, b_ref, o_ref):
    # conv3 matmul + bias + identity residual + ReLU (f32 epilogue).
    y = jnp.dot(x_ref[...], w_ref[...], preferred_element_type=jnp.float32)
    y = y + b_ref[...] + r_ref[...].astype(jnp.float32)
    o_ref[...] = jnp.maximum(y, 0.0).astype(o_ref.dtype)


def _mm_dual_bias_relu_kernel(x_ref, r_ref, w_ref, ws_ref, b_ref, o_ref):
    # conv3 matmul + fused projection-shortcut matmul + combined bias + ReLU.
    y = jnp.dot(x_ref[...], w_ref[...], preferred_element_type=jnp.float32)
    y = y + jnp.dot(r_ref[...], ws_ref[...], preferred_element_type=jnp.float32)
    y = y + b_ref[...]
    o_ref[...] = jnp.maximum(y, 0.0).astype(o_ref.dtype)


def _conv3x3_s1_kernel(x_ref, w_ref, b_ref, o_ref, xpad_ref, *, th):
    # 3x3 conv, stride 1, pad 1, + bias + ReLU for one batch element / Cout tile.
    #   x_ref   : (H, W, Cp)        unpadded plane (DMA'd once per batch elem)
    #   w_ref   : (9*Cp, TCout)     taps folded into K, ordering (dh, dw, ci)
    #   b_ref   : (1, TCout)
    #   o_ref   : (H, W, TCout)
    #   xpad_ref: (H+2, W+2, Cp)    VMEM scratch, zero border built in-kernel
    # The padded plane / im2col patches never exist in HBM; each row block of
    # TH output rows issues ONE (TH*Wo, 9*Cp) @ (9*Cp, TCout) MXU dot.
    h, w, cp = x_ref.shape
    ho, wo, tc = o_ref.shape
    k9 = 9 * cp

    @pl.when(pl.program_id(1) == 0)     # Cout axis is "arbitrary": fill once.
    def _():
        xpad_ref[...] = jnp.zeros_like(xpad_ref)
        xpad_ref[1:h + 1, 1:w + 1, :] = x_ref[...]

    bias = b_ref[...].astype(jnp.float32)                      # (1, TCout)
    nt = pl.cdiv(ho, th)
    aligned = (th % 8 == 0) and ((ho - th) % 8 == 0)

    def row_block(t, carry):
        # Clamp the last block (overlap-recompute); each row is independent.
        r0 = jnp.minimum(t * th, ho - th)
        if aligned:
            r0 = pl.multiple_of(r0, 8)
        taps = [xpad_ref[pl.ds(r0 + dh, th), dw:dw + wo, :]
                for dh in range(3) for dw in range(3)]
        patch = jnp.concatenate(taps, axis=-1).reshape(th * wo, k9)
        y = jnp.dot(patch, w_ref[...], preferred_element_type=jnp.float32)
        y = jnp.maximum(y + bias, 0.0)
        o_ref[pl.ds(r0, th)] = y.reshape(th, wo, tc).astype(o_ref.dtype)
        return carry

    jax.lax.fori_loop(0, nt, row_block, 0)


def _conv3x3_strided_kernel(x_ref, w_ref, b_ref, o_ref, *, stride, cin):
    # Fallback 3x3 conv for stride > 1 (pre-padded, width space-to-depth input).
    #   x_ref: (Hp, Wb, G*cin)   w_ref: (9, cin, TCout)   o_ref: (Ho, Wo, TCout)
    # TODO(synk): apply the stride-1 optimizations (in-kernel padding, row
    # blocking, tap-folded K) to this path as well.
    ho_n, wo, tcn = o_ref.shape
    bias = b_ref[...].astype(jnp.float32)

    def row_body(ho, carry):
        acc = jnp.zeros((wo, tcn), jnp.float32)
        for dh in range(3):
            xrow = x_ref[pl.ds(ho * stride + dh, 1)][0]          # (Wb, G*cin)
            for dw in range(3):
                q, g = dw // stride, dw % stride
                patch = xrow[q:q + wo, g * cin:(g + 1) * cin]    # (Wo, cin)
                acc = acc + jnp.dot(patch, w_ref[dh * 3 + dw],
                                    preferred_element_type=jnp.float32)
        y = jnp.maximum(acc + bias, 0.0)
        o_ref[pl.ds(ho, 1)] = y[None].astype(o_ref.dtype)
        return carry

    jax.lax.fori_loop(0, ho_n, row_body, 0)


# ------------------------------ call wrappers ------------------------------ #
def _matmul_bias_act(x2d, w, bias, *, relu):
    m, k = x2d.shape
    cout = w.shape[1]
    tm = _pick_tm(m, x2d.dtype.itemsize)
    tcn = _pick_tcout(cout)
    jn = cout // tcn
    const_w = jn == 1
    # No jnp.pad of the activation: ragged last M block (outputs are clipped,
    # each output row only depends on its own input row).
    return pl.pallas_call(
        functools.partial(_mm_bias_act_kernel, apply_relu=relu),
        out_shape=jax.ShapeDtypeStruct((m, cout), x2d.dtype),
        grid=(pl.cdiv(m, tm), jn),
        in_specs=[
            pl.BlockSpec((tm, k), lambda i, j: (i, 0)),
            _weight_spec((k, tcn), lambda i, j: (0, j), const_w),
            _weight_spec((1, tcn), lambda i, j: (0, j), const_w),
        ],
        out_specs=pl.BlockSpec((tm, tcn), lambda i, j: (i, j)),
        compiler_params=_compiler_params(2),
    )(x2d, w, bias.reshape(1, -1))


def _conv3x3_s1(x_nhwc, w2f, bias):
    # stride-1 3x3 conv: unpadded input, all padding / im2col done in-kernel.
    n, h, w, cp = x_nhwc.shape
    cout = w2f.shape[1]
    tcn = _pick_tcout(cout)
    jn = cout // tcn
    const_w = jn == 1
    th = min(h, max(8, 256 // max(w, 1)))   # target M = TH*Wo ~ a few hundred
    # TODO(synk): add an Ho-tile grid axis (with halo DMA) so v7x's two
    # TensorCores have parallel work even when n * jn is small.
    return pl.pallas_call(
        functools.partial(_conv3x3_s1_kernel, th=th),
        out_shape=jax.ShapeDtypeStruct((n, h, w, cout), x_nhwc.dtype),
        grid=(n, jn),
        in_specs=[
            pl.BlockSpec((None, h, w, cp), lambda b, j: (b, 0, 0, 0)),
            _weight_spec((9 * cp, tcn), lambda b, j: (0, j), const_w),
            _weight_spec((1, tcn), lambda b, j: (0, j), const_w),
        ],
        out_specs=pl.BlockSpec((None, h, w, tcn), lambda b, j: (b, 0, 0, j)),
        scratch_shapes=[pltpu.VMEM((h + 2, w + 2, cp), x_nhwc.dtype)],
        compiler_params=_compiler_params(2, ("parallel", "arbitrary")),
    )(x_nhwc, w2f, bias.reshape(1, -1))


def _conv3x3_strided(x_nhwc, w9, bias, *, stride, cin):
    # Fallback path for stride > 1: wrapper-side pad + width space-to-depth so
    # every tap slice stays contiguous in-kernel.
    # TODO(synk): move this prep into the kernel too (one extra HBM pass here).
    n, h, w, c = x_nhwc.shape
    assert c == cin
    ho = (h + 2 - 3) // stride + 1
    wo = (w + 2 - 3) // stride + 1
    hp = h + 2
    wp = w + 2
    wb = -(-wp // stride)
    pad_r = wb * stride - wp
    xp = jnp.pad(x_nhwc, ((0, 0), (1, 1), (1, 1 + pad_r), (0, 0)))
    xprep = xp.reshape(n, hp, wb, stride * c)
    cg = xprep.shape[-1]
    cout = w9.shape[2]
    tcn = _pick_tcout(cout)
    jn = cout // tcn
    const_w = jn == 1
    out = pl.pallas_call(
        functools.partial(_conv3x3_strided_kernel, stride=stride, cin=cin),
        out_shape=jax.ShapeDtypeStruct((n, ho, wo, cout), x_nhwc.dtype),
        grid=(n, jn),
        in_specs=[
            pl.BlockSpec((None, hp, wb, cg), lambda b, j: (b, 0, 0, 0)),
            _weight_spec((9, cin, tcn), lambda b, j: (0, 0, j), const_w),
            _weight_spec((1, tcn), lambda b, j: (0, j), const_w),
        ],
        out_specs=pl.BlockSpec((None, ho, wo, tcn), lambda b, j: (b, 0, 0, j)),
        compiler_params=_compiler_params(2),
    )(xprep, w9, bias.reshape(1, -1))
    return out, ho, wo


def _conv3_shortcut_add_relu(h2d, res2d, w3, b3, ws=None, bs=None, *, out_dtype):
    m, kh = h2d.shape
    cout = w3.shape[1]
    tm = _pick_tm(m, h2d.dtype.itemsize)
    tcn = _pick_tcout(cout)
    jn = cout // tcn
    const_w = jn == 1
    grid = (pl.cdiv(m, tm), jn)      # ragged last block, no jnp.pad copies
    cparams = _compiler_params(2)
    if ws is None:
        # identity shortcut: residual already has cout channels.
        return pl.pallas_call(
            _mm_bias_add_relu_kernel,
            out_shape=jax.ShapeDtypeStruct((m, cout), out_dtype),
            grid=grid,
            in_specs=[
                pl.BlockSpec((tm, kh), lambda i, j: (i, 0)),
                pl.BlockSpec((tm, tcn), lambda i, j: (i, j)),
                _weight_spec((kh, tcn), lambda i, j: (0, j), const_w),
                _weight_spec((1, tcn), lambda i, j: (0, j), const_w),
            ],
            out_specs=pl.BlockSpec((tm, tcn), lambda i, j: (i, j)),
            compiler_params=cparams,
        )(h2d, res2d, w3, b3.reshape(1, -1))
    ks = res2d.shape[1]
    bias = (b3 + bs).reshape(1, -1)  # combined per-channel bias
    return pl.pallas_call(
        _mm_dual_bias_relu_kernel,
        out_shape=jax.ShapeDtypeStruct((m, cout), out_dtype),
        grid=grid,
        in_specs=[
            pl.BlockSpec((tm, kh), lambda i, j: (i, 0)),
            pl.BlockSpec((tm, ks), lambda i, j: (i, 0)),
            _weight_spec((kh, tcn), lambda i, j: (0, j), const_w),
            _weight_spec((ks, tcn), lambda i, j: (0, j), const_w),
            _weight_spec((1, tcn), lambda i, j: (0, j), const_w),
        ],
        out_specs=pl.BlockSpec((tm, tcn), lambda i, j: (i, j)),
        compiler_params=cparams,
    )(h2d, res2d, w3, ws, bias)


# --------------------------- parameters / forward --------------------------- #
def init_bottleneck_params(key, in_planes, planes):
    ks = jax.random.split(key, 4)
    out_planes = EXPANSION * planes
    p = {
        # conv weights stored channel-last: (kh, kw, Cin, Cout) / (Cin, Cout)
        "w1": 0.1 * jax.random.normal(ks[0], (in_planes, planes), jnp.float32),
        "w2": 0.1 * jax.random.normal(ks[1], (3, 3, planes, planes), jnp.float32),
        "w3": 0.1 * jax.random.normal(ks[2], (planes, out_planes), jnp.float32),
        "ws": 0.1 * jax.random.normal(ks[3], (in_planes, out_planes), jnp.float32),
    }
    for name, c in (("bn1", planes), ("bn2", planes),
                    ("bn3", out_planes), ("bns", out_planes)):
        p[name + "_g"] = jnp.ones((c,), jnp.float32)
        p[name + "_b"] = jnp.zeros((c,), jnp.float32)
        p[name + "_m"] = jnp.zeros((c,), jnp.float32)   # running mean
        p[name + "_v"] = jnp.ones((c,), jnp.float32)    # running var
    return p


def _fold_bn_into_conv(w, params, name, eps=1e-5):
    # Fold inference-mode BN into the conv: scale goes into the weight columns
    # (one-time constant fold), leaving only a per-channel bias for the kernel.
    scale = params[name + "_g"] / jnp.sqrt(params[name + "_v"] + eps)
    bias = params[name + "_b"] - params[name + "_m"] * scale
    return w * scale, bias.astype(jnp.float32)


def bottleneck_forward(x_nchw, params, in_planes, planes, stride=1,
                       compute_dtype=jnp.float32):
    """Bottleneck forward.  compute_dtype=bfloat16 is recommended on all TPU
    generations (v5e/v6e/v7x): the 1x1 stages are HBM-bound, the MXU runs bf16
    natively, and all epilogues here stay in f32."""
    out_planes = EXPANSION * planes
    out_dtype = x_nchw.dtype
    cdt = compute_dtype
    # Lane-dense intermediate channel width: conv1/conv2 Cout zero-padded to a
    # multiple of 128 so their output stores are unmasked (padded channels are
    # exact zeros and contribute nothing downstream).
    planes_p = _round_up(planes, 128)
    pad_c = planes_p - planes

    # TODO(synk): in a full ResNet stack, keep the whole network NHWC and hoist
    # the NCHW<->NHWC conversions out of the per-block hot path.
    x = jnp.transpose(x_nchw, (0, 2, 3, 1))                      # NHWC
    n, h, w, cin = x.shape
    assert cin == in_planes

    w1, b1 = _fold_bn_into_conv(params["w1"], params, "bn1")    # (cin, planes)
    w2, b2 = _fold_bn_into_conv(params["w2"], params, "bn2")    # (3,3,pl,pl)
    w3, b3 = _fold_bn_into_conv(params["w3"], params, "bn3")    # (pl, out)
    w1p = jnp.pad(w1, ((0, 0), (0, pad_c)))
    b1p = jnp.pad(b1, ((0, pad_c),))
    w2p = jnp.pad(w2, ((0, 0), (0, 0), (0, pad_c), (0, pad_c)))
    b2p = jnp.pad(b2, ((0, pad_c),))
    w3p = jnp.pad(w3, ((0, pad_c), (0, 0)))                      # pad K rows

    # ---- conv1 (1x1) + bn1 + relu : flattened-M matmul ---------------------
    x2d = x.reshape(n * h * w, cin).astype(cdt)
    h1 = _matmul_bias_act(x2d, w1p.astype(cdt), b1p, relu=True)  # (M, planes_p)
    h1 = h1.reshape(n, h, w, planes_p)

    # ---- conv2 (3x3, stride, pad=1) + bn2 + relu ---------------------------
    if stride == 1:
        # padding + im2col + 9-tap fold all happen in-kernel (no HBM pass).
        w2f = w2p.reshape(9 * planes_p, planes_p).astype(cdt)
        h2 = _conv3x3_s1(h1, w2f, b2p)
        ho, wo = h, w
    else:
        h2, ho, wo = _conv3x3_strided(
            h1, w2p.reshape(9, planes_p, planes_p).astype(cdt), b2p,
            stride=stride, cin=planes_p)

    # ---- conv3 (1x1) + bn3 + shortcut + relu : fused final kernel ----------
    m2 = n * ho * wo
    h2d = h2.reshape(m2, planes_p)
    use_projection = (stride != 1) or (in_planes != out_planes)
    if use_projection:
        ws, bs = _fold_bn_into_conv(params["ws"], params, "bns")
        # TODO(synk): for stride>1, read the strided residual in-kernel instead
        # of this wrapper-side XLA gather copy.
        xs = x if stride == 1 else x[:, ::stride, ::stride, :]
        res2d = xs.reshape(m2, cin).astype(cdt)
        out2d = _conv3_shortcut_add_relu(h2d, res2d, w3p.astype(cdt), b3,
                                         ws.astype(cdt), bs, out_dtype=out_dtype)
    else:
        # identity shortcut (only reachable with stride == 1, cin == out_planes)
        res2d = x.reshape(m2, out_planes).astype(cdt)
        out2d = _conv3_shortcut_add_relu(h2d, res2d, w3p.astype(cdt), b3,
                                         out_dtype=out_dtype)

    # TODO(synk): int8 weights on v6e / fp8 on v7x for the 1x1 stages once the
    # surrounding HBM traffic is the remaining bottleneck.
    out = out2d.reshape(n, ho, wo, out_planes)
    return jnp.transpose(out, (0, 3, 1, 2))                      # -> NCHW


# --------------------------- pure-JAX reference ----------------------------- #
def _ref_forward(x_nchw, params, in_planes, planes, stride=1):
    def conv(x, w_hwio, strides, pad):
        return jax.lax.conv_general_dilated(
            x, w_hwio, window_strides=strides, padding=pad,
            dimension_numbers=("NHWC", "HWIO", "NHWC"),
            precision=jax.lax.Precision.HIGHEST)

    def bn(x, g, b, m, v, eps=1e-5):
        return (x - m) / jnp.sqrt(v + eps) * g + b

    out_planes = EXPANSION * planes
    x = jnp.transpose(x_nchw, (0, 2, 3, 1))
    o = conv(x, params["w1"][None, None], (1, 1), "VALID")
    o = jax.nn.relu(bn(o, params["bn1_g"], params["bn1_b"],
                       params["bn1_m"], params["bn1_v"]))
    o = conv(o, params["w2"], (stride, stride), [(1, 1), (1, 1)])
    o = jax.nn.relu(bn(o, params["bn2_g"], params["bn2_b"],
                       params["bn2_m"], params["bn2_v"]))
    o = conv(o, params["w3"][None, None], (1, 1), "VALID")
    o = bn(o, params["bn3_g"], params["bn3_b"], params["bn3_m"], params["bn3_v"])
    if stride != 1 or in_planes != out_planes:
        sc = conv(x, params["ws"][None, None], (stride, stride), "VALID")
        sc = bn(sc, params["bns_g"], params["bns_b"],
                params["bns_m"], params["bns_v"])
    else:
        sc = x
    return jnp.transpose(jax.nn.relu(o + sc), (0, 3, 1, 2))


if __name__ == "__main__":
    key = jax.random.PRNGKey(0)
    kx, kp, kx2, kp2 = jax.random.split(key, 4)

    # Case 1: projection shortcut (in_planes != expansion*planes), stride=1.
    batch, in_planes, planes, hw, stride = 2, 8, 4, 16, 1
    x = jax.random.normal(kx, (batch, in_planes, hw, hw), jnp.float32)  # NCHW
    params = init_bottleneck_params(kp, in_planes, planes)

    y = jax.block_until_ready(
        bottleneck_forward(x, params, in_planes, planes, stride))
    assert y.shape == (batch, EXPANSION * planes, hw, hw)
    y_ref = _ref_forward(x, params, in_planes, planes, stride)
    assert jnp.allclose(y, y_ref, rtol=2e-2, atol=5e-3), \
        float(jnp.max(jnp.abs(y - y_ref)))

    # Case 2: identity shortcut (in_planes == expansion*planes), stride=1.
    in_planes2, planes2 = 16, 4
    x2 = jax.random.normal(kx2, (batch, in_planes2, hw, hw), jnp.float32)
    params2 = init_bottleneck_params(kp2, in_planes2, planes2)
    y2 = jax.block_until_ready(
        bottleneck_forward(x2, params2, in_planes2, planes2, 1))
    y2_ref = _ref_forward(x2, params2, in_planes2, planes2, 1)
    assert y2.shape == (batch, EXPANSION * planes2, hw, hw)
    assert jnp.allclose(y2, y2_ref, rtol=2e-2, atol=5e-3), \
        float(jnp.max(jnp.abs(y2 - y2_ref)))

    # Case 3: bf16 activations/weights (recommended on all gens), loose check.
    y_bf16 = jax.block_until_ready(
        bottleneck_forward(x, params, in_planes, planes, stride,
                           compute_dtype=jnp.bfloat16))
    assert jnp.allclose(y_bf16, y_ref, rtol=1e-1, atol=1e-1), \
        float(jnp.max(jnp.abs(y_bf16 - y_ref)))

    print("KERNEL_OK")
</pallas_src>

<mosaic_0001>
module attributes {stable_mosaic.version = 11 : i64} {
  func.func @_k(%arg0: i32, %arg1: memref<8x128xf32, #tpu.memory_space<vmem>>, %arg2: memref<8x128xf32, #tpu.memory_space<vmem>>) attributes {dimension_semantics = [#tpu.dimension_semantics<arbitrary>], iteration_bounds = array<i64: 2>, scalar_prefetch = 0 : i64, scratch_operands = 0 : i64, tpu.core_type = #tpu.core_type<tc>, window_params = [{pipeline_mode = #tpu.pipeline_mode<synchronous>, transform_indices = @transform_0, window_bounds = array<i64: 8, 128>}, {pipeline_mode = #tpu.pipeline_mode<synchronous>, transform_indices = @transform_1, window_bounds = array<i64: 8, 128>}]} {
    %c0 = arith.constant 0 : index
    %c0_0 = arith.constant 0 : index
    %0 = vector.load %arg1[%c0, %c0_0] : memref<8x128xf32, #tpu.memory_space<vmem>>, vector<8x128xf32>
    %cst = arith.constant 1.000000e+00 : f32
    %1 = vector.broadcast %cst : f32 to vector<8x128xf32>
    %2 = arith.addf %0, %1 : vector<8x128xf32>
    %c0_1 = arith.constant 0 : index
    %c0_2 = arith.constant 0 : index
    %3 = vector.load %arg2[%c0_1, %c0_2] : memref<8x128xf32, #tpu.memory_space<vmem>>, vector<8x128xf32>
    tpu.vector_store %arg2[%c0_1, %c0_2], %2 {strides = array<i32>} : memref<8x128xf32, #tpu.memory_space<vmem>>, vector<8x128xf32>,
    return
  }
  func.func @transform_0(%arg0: i32) -> (i32, i32) {
    %c0_i32 = arith.constant 0 : i32
    %c0_i32_0 = arith.constant 0 : i32
    %c0_i32_1 = arith.constant 0 : i32
    return %c0_i32, %c0_i32_0 : i32, i32
  }
  func.func @transform_1(%arg0: i32) -> (i32, i32) {
    %c0_i32 = arith.constant 0 : i32
    %c0_i32_0 = arith.constant 0 : i32
    %c0_i32_1 = arith.constant 0 : i32
    return %c0_i32, %c0_i32_0 : i32, i32
  }
}

module attributes {stable_mosaic.version = 11 : i64} {
  func.func @_mm_bias_act_kernel(%arg0: i32, %arg1: i32, %arg2: memref<512x8xf32, #tpu.memory_space<vmem>>, %arg3: memref<8x128xf32, #tpu.memory_space<vmem>>, %arg4: memref<1x128xf32, #tpu.memory_space<vmem>>, %arg5: memref<512x128xf32, #tpu.memory_space<vmem>>) attributes {dimension_semantics = [#tpu.dimension_semantics<parallel>, #tpu.dimension_semantics<parallel>], iteration_bounds = array<i64: 1, 1>, scalar_prefetch = 0 : i64, scratch_operands = 0 : i64, tpu.core_type = #tpu.core_type<tc>, window_params = [{transform_indices = @transform_0, window_bounds = array<i64: 512, 8>}, {transform_indices = @transform_1, window_bounds = array<i64: 8, 128>}, {transform_indices = @transform_2, window_bounds = array<i64: 1, 128>}, {transform_indices = @transform_3, window_bounds = array<i64: 512, 128>}]} {
    %c0 = arith.constant 0 : index
    %c0_0 = arith.constant 0 : index
    %0 = vector.load %arg2[%c0, %c0_0] : memref<512x8xf32, #tpu.memory_space<vmem>>, vector<512x8xf32>
    %c0_1 = arith.constant 0 : index
    %c0_2 = arith.constant 0 : index
    %1 = vector.load %arg3[%c0_1, %c0_2] : memref<8x128xf32, #tpu.memory_space<vmem>>, vector<8x128xf32>
    %cst = arith.constant dense<0.000000e+00> : vector<512x128xf32>
    %2 = tpu.matmul %0, %1, %cst {dimension_numbers = #tpu.dot_dimension_numbers<[1], [0], [0], [1], [0, 0, 1, 1], [], []>} : vector<512x8xf32>, vector<8x128xf32>, vector<512x128xf32> -> vector<512x128xf32>
    %c0_3 = arith.constant 0 : index
    %c0_4 = arith.constant 0 : index
    %3 = vector.load %arg4[%c0_3, %c0_4] : memref<1x128xf32, #tpu.memory_space<vmem>>, vector<1x128xf32>
    %4 = vector.broadcast %3 : vector<1x128xf32> to vector<512x128xf32>
    %5 = arith.addf %2, %4 : vector<512x128xf32>
    %cst_5 = arith.constant 0.000000e+00 : f32
    %6 = vector.broadcast %cst_5 : f32 to vector<512x128xf32>
    %7 = arith.maximumf %5, %6 : vector<512x128xf32>
    %c0_6 = arith.constant 0 : index
    %c0_7 = arith.constant 0 : index
    %8 = vector.load %arg5[%c0_6, %c0_7] : memref<512x128xf32, #tpu.memory_space<vmem>>, vector<512x128xf32>
    tpu.vector_store %arg5[%c0_6, %c0_7], %7 {strides = array<i32>} : memref<512x128xf32, #tpu.memory_space<vmem>>, vector<512x128xf32>,
    return
  }
  func.func @transform_0(%arg0: i32, %arg1: i32) -> (i32, i32) {
    %c0_i32 = arith.constant 0 : i32
    %c0_i32_0 = arith.constant 0 : i32
    return %arg0, %c0_i32 : i32, i32
  }
  func.func @transform_1(%arg0: i32, %arg1: i32) -> (i32, i32) {
    %c0_i32 = arith.constant 0 : i32
    %c0_i32_0 = arith.constant 0 : i32
    return %c0_i32, %arg1 : i32, i32
  }
  func.func @transform_2(%arg0: i32, %arg1: i32) -> (i32, i32) {
    %c0_i32 = arith.constant 0 : i32
    %c0_i32_0 = arith.constant 0 : i32
    return %c0_i32, %arg1 : i32, i32
  }
  func.func @transform_3(%arg0: i32, %arg1: i32) -> (i32, i32) {
    %c0_i32 = arith.constant 0 : i32
    return %arg0, %arg1 : i32, i32
  }
}

</mosaic_0001>

<llo_original>
// kernel: tpu_custom_call.1
$region0: #{tpu_custom_call.1}
  #allocation0 [shape = 'u32[]', space=smem, size = 0x4, offset = 0x4, fixed_abs, tag = 'smem constant byte address 0x4 - core index']
  #allocation1 [shape = 'u32[144,128]{1,0:T(1,128)}', space=vmem, size = 0x12000, scoped, tag = 'internal scratch']
  %s0 = inlined_call_operand.hbm [shape: f32[8,128], index: 0, kind: input, shape index: {}]
  %s1 = inlined_call_operand.hbm [shape: f32[8,128], index: 1, kind: output, shape index: {}]
  %s2 = sld [smem:[#allocation0]]
  $region41: #{tpu_custom_call.1} parent=0
    _
  %s4 = ssub.s32 1, %s2
  %s5 = scalar_select 0, %s4, %s2
  $region1: #{tpu_custom_call.1} parent=0
    #allocation2 [shape = 'u8[4096]{0}', space=vmem, size = 0x1000, scoped, tag = 'input window, operand 0, single buffered']
    #allocation3 [shape = 's32[2]{0}', space=sflag, size = 0x8, scoped, tag = 'scoped memory for tpu_custom_call.1']
    #allocation4 [shape = 's32[2]{0}', space=sflag, size = 0x8, scoped, tag = 'scoped memory for tpu_custom_call.1']
    #allocation5 [shape = 'u8[4096]{0}', space=vmem, size = 0x1000, scoped, tag = 'output window, operand 0, single buffered']
    %6 = vsyncpa [#allocation3], 0
    %7 = vsyncpa [#allocation4], 0
    loop: start=0, step=1, limit=4
    $region2: #{tpu_custom_call.1} parent=1 // loop_pre_header
      _
    $region3: #{tpu_custom_call.1} parent=1 // loop_header
      %s9 = sphi 0, %s13
      %p10 = scmp.ge.s32.totalorder %s9, 4
      %s17 = sphi 0, %s17
      %s19 = sphi 0, %s17
      %s20 = sphi 0, %s19
      %s34 = sphi 0, %s20
      %s38 = sphi 0, %s38
      %s40 = sphi 0, %s38
      %s41 = sphi 0, %s40
      %s55 = sphi 0, %s41
    $region4: #{tpu_custom_call.1} parent=1 // loop_header_branch
      %12 = sbr.rel (%p10) target = $region8
    $region5: #{tpu_custom_call.1} parent=1 // loop_body
      %s14 = ssub.s32 %s9, 1
      %s15 = ssub.s32 %s9, 2
      %s16 = sadd.s32 %s9, 1
      %s18 = sadd.s32 %s17, 1
      %p21 = scmp.eq.s32.totalorder %s9, 1
      %p22 = scmp.ne.s32.totalorder %s17, %s19
      %p23 = scmp.eq.s32.totalorder %s9, 0
      %p24 = por %p22, %p23
      %p25 = scmp.ne.s32.totalorder %s17, %s19
      %p26 = scmp.eq.s32.totalorder %s14, 1
      %p27 = por %p25, %p26
      %p28 = scmp.ne.s32.totalorder %s19, %s20
      %p29 = scmp.eq.s32.totalorder %s14, 0
      %p30 = por %p28, %p29
      %p31 = scmp.ne.s32.totalorder %s19, %s20
      %p32 = scmp.eq.s32.totalorder %s15, 1
      %p33 = por %p31, %p32
      %p35 = scmp.ne.s32.totalorder %s20, %s34
      %p36 = scmp.eq.s32.totalorder %s15, 0
      %p37 = por %p35, %p36
      %s39 = sadd.s32 %s38, 1
      %p42 = scmp.eq.s32.totalorder %s9, 1
      %p43 = scmp.ne.s32.totalorder %s38, %s40
      %p44 = scmp.eq.s32.totalorder %s9, 0
      %p45 = por %p43, %p44
      %p46 = scmp.ne.s32.totalorder %s38, %s40
      %p47 = scmp.eq.s32.totalorder %s14, 1
      %p48 = por %p46, %p47
      %p49 = scmp.ne.s32.totalorder %s40, %s41
      %p50 = scmp.eq.s32.totalorder %s14, 0
      %p51 = por %p49, %p50
      %p52 = scmp.ne.s32.totalorder %s40, %s41
      %p53 = scmp.eq.s32.totalorder %s15, 1
      %p54 = por %p52, %p53
      %p56 = scmp.ne.s32.totalorder %s41, %s55
      %p57 = scmp.eq.s32.totalorder %s15, 0
      %p58 = por %p56, %p57
      %p59 = scmp.le.s32.totalorder 1, %s9
      %p60 = scmp.lt.s32.totalorder %s9, 3
      %p61 = pnand %p59, %p60
      %p62 = pneg %p61
      // Predicated region
      $region9: #{tpu_custom_call.1} parent=5 // pred_check
        _
      $region10: #{tpu_custom_call.1} parent=5 // pred_check_branch
        %64 = sbr.rel (%p61) target = $region12
      $region11: #{tpu_custom_call.1} parent=5 // pred_region
        %s65 = ssub.s32 %s9, 1
        // Predicated region
        $region13: #{tpu_custom_call.1} parent=11 // pred_check
          %p66 = pneg %p30
        $region14: #{tpu_custom_call.1} parent=11 // pred_check_branch
          %68 = sbr.rel (%p66) target = $region16
        $region15: #{tpu_custom_call.1} parent=11 // pred_region
          %s70 = ssub.s32 128, 128
          %71 = vsyncadd [#allocation3], %s70
          %s73 = sshll.u32 [#allocation2], 4
          %s74 = int_to_ptr.vmem [resolvable:$true] %s73
          %76 = dma.hbm_to_vmem [thread:$0]  %s0, 128, %s74, [#allocation3]
        $region16: #{tpu_custom_call.1} parent=11 // pred_fallthru
          _
      $region12: #{tpu_custom_call.1} parent=5 // pred_fallthru
        _
      %p77 = scmp.lt.s32.totalorder %s9, 2
      // Predicated region
      $region17: #{tpu_custom_call.1} parent=5 // pred_check
        %p78 = pneg %p77
      $region18: #{tpu_custom_call.1} parent=5 // pred_check_branch
        %80 = sbr.rel (%p78) target = $region20
      $region19: #{tpu_custom_call.1} parent=5 // pred_region
        _
      $region20: #{tpu_custom_call.1} parent=5 // pred_fallthru
        _
      %p81 = scmp.le.s32.totalorder 1, %s9
      %p82 = scmp.lt.s32.totalorder %s9, 3
      %p83 = pnand %p81, %p82
      %p84 = pneg %p83
      // Predicated region
      $region21: #{tpu_custom_call.1} parent=5 // pred_check
        _
      $region22: #{tpu_custom_call.1} parent=5 // pred_check_branch
        %86 = sbr.rel (%p83) target = $region24
      $region23: #{tpu_custom_call.1} parent=5 // pred_region
        %s87 = ssub.s32 %s9, 1
        // Predicated region
        $region25: #{tpu_custom_call.1} parent=23 // pred_check
          %p88 = pneg %p30
        $region26: #{tpu_custom_call.1} parent=23 // pred_check_branch
          %90 = sbr.rel (%p88) target = $region28
        $region27: #{tpu_custom_call.1} parent=23 // pred_region
          %91 = dma.done [#allocation3], 128
        $region28: #{tpu_custom_call.1} parent=23 // pred_fallthru
          _
        %p92 = pneg %p30
        %p93 = pneg %p27
        %p94 = pneg %p51
        %p95 = pneg %p48
        %v96 = vld [vmem:[#allocation2] sm:$0xff]
        %v97 = vadd.f32 %v96, 1.0
        %98 = vst [vmem:[#allocation5] sm:$0xff] %v97
        // Predicated region
        $region29: #{tpu_custom_call.1} parent=23 // pred_check
          %p99 = pneg %p48
        $region30: #{tpu_custom_call.1} parent=23 // pred_check_branch
          %101 = sbr.rel (%p99) target = $region32
        $region31: #{tpu_custom_call.1} parent=23 // pred_region
          %s103 = ssub.s32 128, 128
          %104 = vsyncadd [#allocation4], %s103
          %s106 = sshll.u32 [#allocation5], 4
          %s107 = int_to_ptr.vmem [resolvable:$true] %s106
          %109 = dma.vmem_to_hbm [thread:$0]  %s107, 128, %s1, [#allocation4]
        $region32: #{tpu_custom_call.1} parent=23 // pred_fallthru
          _
        // Predicated region
        $region33: #{tpu_custom_call.1} parent=23 // pred_check
          %p110 = pneg %p48
        $region34: #{tpu_custom_call.1} parent=23 // pred_check_branch
          %112 = sbr.rel (%p110) target = $region36
        $region35: #{tpu_custom_call.1} parent=23 // pred_region
          %113 = dma.done [#allocation4], 128
        $region36: #{tpu_custom_call.1} parent=23 // pred_fallthru
          _
      $region24: #{tpu_custom_call.1} parent=5 // pred_fallthru
        _
      %p114 = scmp.le.s32.totalorder 2, %s9
      // Predicated region
      $region37: #{tpu_custom_call.1} parent=5 // pred_check
        %p115 = pneg %p114
      $region38: #{tpu_custom_call.1} parent=5 // pred_check_branch
        %117 = sbr.rel (%p115) target = $region40
      $region39: #{tpu_custom_call.1} parent=5 // pred_region
        %s118 = ssub.s32 %s9, 2
      $region40: #{tpu_custom_call.1} parent=5 // pred_fallthru
        _
    $region6: #{tpu_custom_call.1} parent=1 // loop_footer
      %s13 = sadd.s32 1, %s9
    $region7: #{tpu_custom_call.1} parent=1 // loop_footer_branch
      %8 = sbr.rel target = $region3
    $region8: #{tpu_custom_call.1} parent=1 // loop_exit
      _
    %119 = vsyncpa [#allocation3], 1
    %s120 = scalar_lea.sflag [#allocation3], 1
    %121 = vsyncpa %s120, 1
    %122 = vsyncpa [#allocation4], 1
    %s123 = scalar_lea.sflag [#allocation4], 1
    %124 = vsyncpa %s123, 1

// kernel: tpu_custom_call.1
$region0: #{tpu_custom_call.1}
  #allocation0 [shape = 'u32[]', space=smem, size = 0x4, offset = 0x4, fixed_abs, tag = 'smem constant byte address 0x4 - core index']
  #allocation1 [shape = 'u32[144,128]{1,0:T(1,128)}', space=vmem, size = 0x12000, scoped, tag = 'internal scratch']
  %s0 = inlined_call_operand.hbm [shape: f32[512,8], index: 0, kind: input, shape index: {}]
  %s1 = inlined_call_operand.hbm [shape: f32[8,128], index: 1, kind: input, shape index: {}]
  %s2 = inlined_call_operand.hbm [shape: f32[1,128], index: 2, kind: input, shape index: {}]
  %s3 = inlined_call_operand.hbm [shape: f32[512,128], index: 3, kind: output, shape index: {}]
  %s4 = sld [smem:[#allocation0]]
  $region34: #{tpu_custom_call.1} parent=0
    _
  %s6 = ssub.s32 1, %s4
  %s7 = scalar_select 0, %s6, %s4
  $region1: #{tpu_custom_call.1} parent=0
    #allocation2 [shape = 'u8[262144]{0}', space=vmem, size = 0x40000, scoped, tag = 'input window, operand 0, single buffered']
    #allocation3 [shape = 's32[1]{0}', space=sflag, size = 0x4, scoped, tag = 'scoped memory for tpu_custom_call.1']
    #allocation4 [shape = 's32[1]{0}', space=sflag, size = 0x4, scoped, tag = 'scoped memory for tpu_custom_call.1']
    #allocation5 [shape = 'u8[4096]{0}', space=vmem, size = 0x1000, scoped, tag = 'input window, operand 1, single buffered']
    #allocation6 [shape = 's32[1]{0}', space=sflag, size = 0x4, scoped, tag = 'scoped memory for tpu_custom_call.1']
    #allocation7 [shape = 'u8[512]{0}', space=vmem, size = 0x400, scoped, tag = 'input window, operand 2, single buffered']
    #allocation8 [shape = 'u8[262144]{0}', space=vmem, size = 0x40000, scoped, tag = 'output window, operand 0, single buffered']
    %8 = vsyncpa [#allocation3], 0
    %9 = vsyncpa [#allocation6], 0
    %10 = vsyncpa [#allocation4], 0
    // Predicated region
    $region2: #{tpu_custom_call.1} parent=1 // pred_check
      _
    $region3: #{tpu_custom_call.1} parent=1 // pred_check_branch
      %12 = sbr.rel (0) target = $region5
    $region4: #{tpu_custom_call.1} parent=1 // pred_region
      %s14 = ssub.s32 8192, 8192
      %15 = vsyncadd [#allocation3], %s14
      %s16 = sshll.u32 [#allocation2], 4
      %s17 = int_to_ptr.vmem [resolvable:$true] %s16
      %22 = dma.hbm_to_vmem [thread:$0]  %s0, 8192, %s17, [#allocation3], 128, 128, 8
    $region5: #{tpu_custom_call.1} parent=1 // pred_fallthru
      _
    // Predicated region
    $region6: #{tpu_custom_call.1} parent=1 // pred_check
      _
    $region7: #{tpu_custom_call.1} parent=1 // pred_check_branch
      %24 = sbr.rel (0) target = $region9
    $region8: #{tpu_custom_call.1} parent=1 // pred_region
      %s26 = ssub.s32 128, 128
      %27 = vsyncadd [#allocation6], %s26
      %s29 = sshll.u32 [#allocation5], 4
      %s30 = int_to_ptr.vmem [resolvable:$true] %s29
      %32 = dma.hbm_to_vmem [thread:$0]  %s1, 128, %s30, [#allocation6]
    $region9: #{tpu_custom_call.1} parent=1 // pred_fallthru
      _
    // Predicated region
    $region10: #{tpu_custom_call.1} parent=1 // pred_check
      _
    $region11: #{tpu_custom_call.1} parent=1 // pred_check_branch
      %34 = sbr.rel (0) target = $region13
    $region12: #{tpu_custom_call.1} parent=1 // pred_region
      %s36 = ssub.s32 16, 16
      %37 = vsyncadd [#allocation6], %s36
      %s39 = sshll.u32 [#allocation7], 4
      %s40 = int_to_ptr.vmem [resolvable:$true] %s39
      %42 = dma.hbm_to_vmem [thread:$0]  %s2, 16, %s40, [#allocation6]
    $region13: #{tpu_custom_call.1} parent=1 // pred_fallthru
      _
    // Predicated region
    $region14: #{tpu_custom_call.1} parent=1 // pred_check
      _
    $region15: #{tpu_custom_call.1} parent=1 // pred_check_branch
      %44 = sbr.rel (0) target = $region17
    $region16: #{tpu_custom_call.1} parent=1 // pred_region
      %45 = dma.done [#allocation3], 8192
    $region17: #{tpu_custom_call.1} parent=1 // pred_fallthru
      _
    // Predicated region
    $region18: #{tpu_custom_call.1} parent=1 // pred_check
      _
    $region19: #{tpu_custom_call.1} parent=1 // pred_check_branch
      %47 = sbr.rel (0) target = $region21
    $region20: #{tpu_custom_call.1} parent=1 // pred_region
      %48 = dma.done [#allocation6], 128
    $region21: #{tpu_custom_call.1} parent=1 // pred_fallthru
      _
    // Predicated region
    $region22: #{tpu_custom_call.1} parent=1 // pred_check
      _
    $region23: #{tpu_custom_call.1} parent=1 // pred_check_branch
      %50 = sbr.rel (0) target = $region25
    $region24: #{tpu_custom_call.1} parent=1 // pred_region
      %51 = dma.done [#allocation6], 16
    $region25: #{tpu_custom_call.1} parent=1 // pred_fallthru
      _
    %v52 = vld [vmem:[#allocation2] sm:$0xff]
    %v53 = vld [vmem:[#allocation2 + $0x8] sm:$0xff]
    %v54 = vld [vmem:[#allocation2 + $0x10] sm:$0xff]
    %v55 = vld [vmem:[#allocation2 + $0x18] sm:$0xff]
    %v56 = vld [vmem:[#allocation2 + $0x20] sm:$0xff]
    %v57 = vld [vmem:[#allocation2 + $0x28] sm:$0xff]
    %v58 = vld [vmem:[#allocation2 + $0x30] sm:$0xff]
    %v59 = vld [vmem:[#allocation2 + $0x38] sm:$0xff]
    %v60 = vld [vmem:[#allocation2 + $0x40] sm:$0xff]
    %v61 = vld [vmem:[#allocation2 + $0x48] sm:$0xff]
    %v62 = vld [vmem:[#allocation2 + $0x50] sm:$0xff]
    %v63 = vld [vmem:[#allocation2 + $0x58] sm:$0xff]
    %v64 = vld [vmem:[#allocation2 + $0x60] sm:$0xff]
    %v65 = vld [vmem:[#allocation2 + $0x68] sm:$0xff]
    %v66 = vld [vmem:[#allocation2 + $0x70] sm:$0xff]
    %v67 = vld [vmem:[#allocation2 + $0x78] sm:$0xff]
    %v68 = vld [vmem:[#allocation2 + $0x80] sm:$0xff]
    %v69 = vld [vmem:[#allocation2 + $0x88] sm:$0xff]
    %v70 = vld [vmem:[#allocation2 + $0x90] sm:$0xff]
    %v71 = vld [vmem:[#allocation2 + $0x98] sm:$0xff]
    %v72 = vld [vmem:[#allocation2 + $0xa0] sm:$0xff]
    %v73 = vld [vmem:[#allocation2 + $0xa8] sm:$0xff]
    %v74 = vld [vmem:[#allocation2 + $0xb0] sm:$0xff]
    %v75 = vld [vmem:[#allocation2 + $0xb8] sm:$0xff]
    %v76 = vld [vmem:[#allocation2 + $0xc0] sm:$0xff]
    %v77 = vld [vmem:[#allocation2 + $0xc8] sm:$0xff]
    %v78 = vld [vmem:[#allocation2 + $0xd0] sm:$0xff]
    %v79 = vld [vmem:[#allocation2 + $0xd8] sm:$0xff]
    %v80 = vld [vmem:[#allocation2 + $0xe0] sm:$0xff]
    %v81 = vld [vmem:[#allocation2 + $0xe8] sm:$0xff]
    %v82 = vld [vmem:[#allocation2 + $0xf0] sm:$0xff]
    %v83 = vld [vmem:[#allocation2 + $0xf8] sm:$0xff]
    %v84 = vld [vmem:[#allocation2 + $0x100] sm:$0xff]
    %v85 = vld [vmem:[#allocation2 + $0x108] sm:$0xff]
    %v86 = vld [vmem:[#allocation2 + $0x110] sm:$0xff]
    %v87 = vld [vmem:[#allocation2 + $0x118] sm:$0xff]
    %v88 = vld [vmem:[#allocation2 + $0x120] sm:$0xff]
    %v89 = vld [vmem:[#allocation2 + $0x128] sm:$0xff]
    %v90 = vld [vmem:[#allocation2 + $0x130] sm:$0xff]
    %v91 = vld [vmem:[#allocation2 + $0x138] sm:$0xff]
    %v92 = vld [vmem:[#allocation2 + $0x140] sm:$0xff]
    %v93 = vld [vmem:[#allocation2 + $0x148] sm:$0xff]
    %v94 = vld [vmem:[#allocation2 + $0x150] sm:$0xff]
    %v95 = vld [vmem:[#allocation2 + $0x158] sm:$0xff]
    %v96 = vld [vmem:[#allocation2 + $0x160] sm:$0xff]
    %v97 = vld [vmem:[#allocation2 + $0x168] sm:$0xff]
    %v98 = vld [vmem:[#allocation2 + $0x170] sm:$0xff]
    %v99 = vld [vmem:[#allocation2 + $0x178] sm:$0xff]
    %v100 = vld [vmem:[#allocation2 + $0x180] sm:$0xff]
    %v101 = vld [vmem:[#allocation2 + $0x188] sm:$0xff]
    %v102 = vld [vmem:[#allocation2 + $0x190] sm:$0xff]
    %v103 = vld [vmem:[#allocation2 + $0x198] sm:$0xff]
    %v104 = vld [vmem:[#allocation2 + $0x1a0] sm:$0xff]
    %v105 = vld [vmem:[#allocation2 + $0x1a8] sm:$0xff]
    %v106 = vld [vmem:[#allocation2 + $0x1b0] sm:$0xff]
    %v107 = vld [vmem:[#allocation2 + $0x1b8] sm:$0xff]
    %v108 = vld [vmem:[#allocation2 + $0x1c0] sm:$0xff]
    %v109 = vld [vmem:[#allocation2 + $0x1c8] sm:$0xff]
    %v110 = vld [vmem:[#allocation2 + $0x1d0] sm:$0xff]
    %v111 = vld [vmem:[#allocation2 + $0x1d8] sm:$0xff]
    %v112 = vld [vmem:[#allocation2 + $0x1e0] sm:$0xff]
    %v113 = vld [vmem:[#allocation2 + $0x1e8] sm:$0xff]
    %v114 = vld [vmem:[#allocation2 + $0x1f0] sm:$0xff]
    %v115 = vld [vmem:[#allocation2 + $0x1f8] sm:$0xff]
    %v116 = vld [vmem:[#allocation5] sm:$0xff]
    %v117 = vld [vmem:[#allocation7] sm:$0x1]
    %v119 = vlaneseq
    %v120 = vshrl.u32 %v119, 7
    %v121 = vsub.s32 0, %v120
    %v122 = vrot.slane %v117, %v121
    %vm124 = vcmask 64512
    %v126 = vsel %vm124, %v52, 0
    %v129 = vsel %vm124, %v53, 0
    %v132 = vsel %vm124, %v54, 0
    %v135 = vsel %vm124, %v55, 0
    %v138 = vsel %vm124, %v56, 0
    %v141 = vsel %vm124, %v57, 0
    %v144 = vsel %vm124, %v58, 0
    %v147 = vsel %vm124, %v59, 0
    %v150 = vsel %vm124, %v60, 0
    %v153 = vsel %vm124, %v61, 0
    %v156 = vsel %vm124, %v62, 0
    %v159 = vsel %vm124, %v63, 0
    %v162 = vsel %vm124, %v64, 0
    %v165 = vsel %vm124, %v65, 0
    %v168 = vsel %vm124, %v66, 0
    %v171 = vsel %vm124, %v67, 0
    %v174 = vsel %vm124, %v68, 0
    %v177 = vsel %vm124, %v69, 0
    %v180 = vsel %vm124, %v70, 0
    %v183 = vsel %vm124, %v71, 0
    %v186 = vsel %vm124, %v72, 0
    %v189 = vsel %vm124, %v73, 0
    %v192 = vsel %vm124, %v74, 0
    %v195 = vsel %vm124, %v75, 0
    %v198 = vsel %vm124, %v76, 0
    %v201 = vsel %vm124, %v77, 0
    %v204 = vsel %vm124, %v78, 0
    %v207 = vsel %vm124, %v79, 0
    %v210 = vsel %vm124, %v80, 0
    %v213 = vsel %vm124, %v81, 0
    %v216 = vsel %vm124, %v82, 0
    %v219 = vsel %vm124, %v83, 0
    %v222 = vsel %vm124, %v84, 0
    %v225 = vsel %vm124, %v85, 0
    %v228 = vsel %vm124, %v86, 0
    %v231 = vsel %vm124, %v87, 0
    %v234 = vsel %vm124, %v88, 0
    %v237 = vsel %vm124, %v89, 0
    %v240 = vsel %vm124, %v90, 0
    %v243 = vsel %vm124, %v91, 0
    %v246 = vsel %vm124, %v92, 0
    %v249 = vsel %vm124, %v93, 0
    %v252 = vsel %vm124, %v94, 0
    %v255 = vsel %vm124, %v95, 0
    %v258 = vsel %vm124, %v96, 0
    %v261 = vsel %vm124, %v97, 0
    %v264 = vsel %vm124, %v98, 0
    %v267 = vsel %vm124, %v99, 0
    %v270 = vsel %vm124, %v100, 0
    %v273 = vsel %vm124, %v101, 0
    %v276 = vsel %vm124, %v102, 0
    %v279 = vsel %vm124, %v103, 0
    %v282 = vsel %vm124, %v104, 0
    %v285 = vsel %vm124, %v105, 0
    %v288 = vsel %vm124, %v106, 0
    %v291 = vsel %vm124, %v107, 0
    %v294 = vsel %vm124, %v108, 0
    %v297 = vsel %vm124, %v109, 0
    %v300 = vsel %vm124, %v110, 0
    %v303 = vsel %vm124, %v111, 0
    %v306 = vsel %vm124, %v112, 0
    %v309 = vsel %vm124, %v113, 0
    %v312 = vsel %vm124, %v114, 0
    %v315 = vsel %vm124, %v115, 0
    %317 = vmatprep.subr.mxu0 0.0
    %318 = vmatpush1.msra.mxu0 %v116
    %319 = vmatprep.subr.mxu0 0.0
    %320 = vmatpush1.msra.mxu0 0.0
    %321 = vmatprep.subr.mxu0 0.0
    %322 = vmatpush1.msra.mxu0 0.0
    %323 = vmatprep.subr.mxu0 0.0
    %324 = vmatpush1.msra.mxu0 0.0
    %325 = vmatprep.subr.mxu0 0.0
    %326 = vmatpush1.msra.mxu0 0.0
    %327 = vmatprep.subr.mxu0 0.0
    %328 = vmatpush1.msra.mxu0 0.0
    %329 = vmatprep.subr.mxu0 0.0
    %330 = vmatpush1.msra.mxu0 0.0
    %331 = vmatprep.subr.mxu0 0.0
    %332 = vmatpush1.msra.mxu0 0.0
    %333 = vmatprep.subr.mxu0 0.0
    %334 = vmatpush1.msra.mxu0 0.0
    %335 = vmatprep.subr.mxu0 0.0
    %336 = vmatpush1.msra.mxu0 0.0
    %337 = vmatprep.subr.mxu0 0.0
    %338 = vmatpush1.msra.mxu0 0.0
    %339 = vmatprep.subr.mxu0 0.0
    %340 = vmatpush1.msra.mxu0 0.0
    %341 = vmatprep.subr.mxu0 0.0
    %342 = vmatpush1.msra.mxu0 0.0
    %343 = vmatprep.subr.mxu0 0.0
    %344 = vmatpush1.msra.mxu0 0.0
    %345 = vmatprep.subr.mxu0 0.0
    %346 = vmatpush1.msra.mxu0 0.0
    %347 = vmatprep.subr.mxu0 0.0
    %348 = vmatpush1.msra.mxu0 0.0
    %349 = vmatprep.subr.mxu0 0.0
    %350 = vmatpush1.msra.mxu0 0.0
    %351 = vmatprep.subr.mxu0 0.0
    %352 = vmatpush1.msra.mxu0 0.0
    %353 = vmatprep.subr.mxu0 0.0
    %354 = vmatpush1.msra.mxu0 0.0
    %355 = vmatprep.subr.mxu0 0.0
    %356 = vmatpush1.msra.mxu0 0.0
    %357 = vmatprep.subr.mxu0 0.0
    %358 = vmatpush1.msra.mxu0 0.0
    %359 = vmatprep.subr.mxu0 0.0
    %360 = vmatpush1.msra.mxu0 0.0
    %361 = vmatprep.subr.mxu0 0.0
    %362 = vmatpush1.msra.mxu0 0.0
    %363 = vmatprep.subr.mxu0 0.0
    %364 = vmatpush1.msra.mxu0 0.0
    %365 = vmatprep.subr.mxu0 0.0
    %366 = vmatpush1.msra.mxu0 0.0
    %367 = vmatprep.subr.mxu0 0.0
    %368 = vmatpush1.msra.mxu0 0.0
    %369 = vmatprep.subr.mxu0 0.0
    %370 = vmatpush1.msra.mxu0 0.0
    %371 = vmatprep.subr.mxu0 0.0
    %372 = vmatpush1.msra.mxu0 0.0
    %373 = vmatprep.subr.mxu0 0.0
    %374 = vmatpush1.msra.mxu0 0.0
    %375 = vmatprep.subr.mxu0 0.0
    %376 = vmatpush1.msra.mxu0 0.0
    %377 = vmatprep.subr.mxu0 0.0
    %378 = vmatpush1.msra.mxu0 0.0
    %379 = vmatprep.subr.mxu0 0.0
    %380 = vmatpush1.msra.mxu0 0.0
    %381 = vmatprep.mubr.f32.mxu0 0.0
    %382 = vmatmul.mubr.f32.gmra.mrb[0].mxu0 %v126
    %v383 = vpop.f32.mrb[0].mxu0
    %v384 = vadd.f32 %v122, %v383
    %v385 = vpop.f32.mrb[0].mxu0
    %386 = vmatprep.mubr.f32.mxu0 0.0
    %387 = vmatmul.mubr.f32.gmra.mrb[0].mxu0 %v129
    %v388 = vpop.f32.mrb[0].mxu0
    %v389 = vadd.f32 %v122, %v388
    %v390 = vpop.f32.mrb[0].mxu0
    %391 = vmatprep.mubr.f32.mxu0 0.0
    %392 = vmatmul.mubr.f32.gmra.mrb[0].mxu0 %v132
    %v393 = vpop.f32.mrb[0].mxu0
    %v394 = vadd.f32 %v122, %v393
    %v395 = vpop.f32.mrb[0].mxu0
    %396 = vmatprep.mubr.f32.mxu0 0.0
    %397 = vmatmul.mubr.f32.gmra.mrb[0].mxu0 %v135
    %v398 = vpop.f32.mrb[0].mxu0
    %v399 = vadd.f32 %v122, %v398
    %v400 = vpop.f32.mrb[0].mxu0
    %401 = vmatprep.mubr.f32.mxu0 0.0
    %402 = vmatmul.mubr.f32.gmra.mrb[0].mxu0 %v138
    %v403 = vpop.f32.mrb[0].mxu0
    %v404 = vadd.f32 %v122, %v403
    %v405 = vpop.f32.mrb[0].mxu0
    %406 = vmatprep.mubr.f32.mxu0 0.0
    %407 = vmatmul.mubr.f32.gmra.mrb[0].mxu0 %v141
    %v408 = vpop.f32.mrb[0].mxu0
    %v409 = vadd.f32 %v122, %v408
    %v410 = vpop.f32.mrb[0].mxu0
    %411 = vmatprep.mubr.f32.mxu0 0.0
    %412 = vmatmul.mubr.f32.gmra.mrb[0].mxu0 %v144
    %v413 = vpop.f32.mrb[0].mxu0
    %v414 = vadd.f32 %v122, %v413
    %v415 = vpop.f32.mrb[0].mxu0
    %416 = vmatprep.mubr.f32.mxu0 0.0
    %417 = vmatmul.mubr.f32.gmra.mrb[0].mxu0 %v147
    %v418 = vpop.f32.mrb[0].mxu0
    %v419 = vadd.f32 %v122, %v418
    %v420 = vpop.f32.mrb[0].mxu0
    %421 = vmatprep.mubr.f32.mxu0 0.0
    %422 = vmatmul.mubr.f32.gmra.mrb[0].mxu0 %v150
    %v423 = vpop.f32.mrb[0].mxu0
    %v424 = vadd.f32 %v122, %v423
    %v425 = vpop.f32.mrb[0].mxu0
    %426 = vmatprep.mubr.f32.mxu0 0.0
    %427 = vmatmul.mubr.f32.gmra.mrb[0].mxu0 %v153
    %v428 = vpop.f32.mrb[0].mxu0
    %v429 = vadd.f32 %v122, %v428
    %v430 = vpop.f32.mrb[0].mxu0
    %431 = vmatprep.mubr.f32.mxu0 0.0
    %432 = vmatmul.mubr.f32.gmra.mrb[0].mxu0 %v156
    %v433 = vpop.f32.mrb[0].mxu0
    %v434 = vadd.f32 %v122, %v433
    %v435 = vpop.f32.mrb[0].mxu0
    %436 = vmatprep.mubr.f32.mxu0 0.0
    %437 = vmatmul.mubr.f32.gmra.mrb[0].mxu0 %v159
    %v438 = vpop.f32.mrb[0].mxu0
    %v439 = vadd.f32 %v122, %v438
    %v440 = vpop.f32.mrb[0].mxu0
    %441 = vmatprep.mubr.f32.mxu0 0.0
    %442 = vmatmul.mubr.f32.gmra.mrb[0].mxu0 %v162
    %v443 = vpop.f32.mrb[0].mxu0
    %v444 = vadd.f32 %v122, %v443
    %v445 = vpop.f32.mrb[0].mxu0
    %446 = vmatprep.mubr.f32.mxu0 0.0
    %447 = vmatmul.mubr.f32.gmra.mrb[0].mxu0 %v165
    %v448 = vpop.f32.mrb[0].mxu0
    %v449 = vadd.f32 %v122, %v448
    %v450 = vpop.f32.mrb[0].mxu0
    %451 = vmatprep.mubr.f32.mxu0 0.0
    %452 = vmatmul.mubr.f32.gmra.mrb[0].mxu0 %v168
    %v453 = vpop.f32.mrb[0].mxu0
    %v454 = vadd.f32 %v122, %v453
    %v455 = vpop.f32.mrb[0].mxu0
    %456 = vmatprep.mubr.f32.mxu0 0.0
    %457 = vmatmul.mubr.f32.gmra.mrb[0].mxu0 %v171
    %v458 = vpop.f32.mrb[0].mxu0
    %v459 = vadd.f32 %v122, %v458
    %v460 = vpop.f32.mrb[0].mxu0
    %461 = vmatprep.mubr.f32.mxu0 0.0
    %462 = vmatmul.mubr.f32.gmra.mrb[0].mxu0 %v174
    %v463 = vpop.f32.mrb[0].mxu0
    %v464 = vadd.f32 %v122, %v463
    %v465 = vpop.f32.mrb[0].mxu0
    %466 = vmatprep.mubr.f32.mxu0 0.0
    %467 = vmatmul.mubr.f32.gmra.mrb[0].mxu0 %v177
    %v468 = vpop.f32.mrb[0].mxu0
    %v469 = vadd.f32 %v122, %v468
    %v470 = vpop.f32.mrb[0].mxu0
    %471 = vmatprep.mubr.f32.mxu0 0.0
    %472 = vmatmul.mubr.f32.gmra.mrb[0].mxu0 %v180
    %v473 = vpop.f32.mrb[0].mxu0
    %v474 = vadd.f32 %v122, %v473
    %v475 = vpop.f32.mrb[0].mxu0
    %476 = vmatprep.mubr.f32.mxu0 0.0
    %477 = vmatmul.mubr.f32.gmra.mrb[0].mxu0 %v183
    %v478 = vpop.f32.mrb[0].mxu0
    %v479 = vadd.f32 %v122, %v478
    %v480 = vpop.f32.mrb[0].mxu0
    %481 = vmatprep.mubr.f32.mxu0 0.0
    %482 = vmatmul.mubr.f32.gmra.mrb[0].mxu0 %v186
    %v483 = vpop.f32.mrb[0].mxu0
    %v484 = vadd.f32 %v122, %v483
    %v485 = vpop.f32.mrb[0].mxu0
    %486 = vmatprep.mubr.f32.mxu0 0.0
    %487 = vmatmul.mubr.f32.gmra.mrb[0].mxu0 %v189
    %v488 = vpop.f32.mrb[0].mxu0
    %v489 = vadd.f32 %v122, %v488
    %v490 = vpop.f32.mrb[0].mxu0
    %491 = vmatprep.mubr.f32.mxu0 0.0
    %492 = vmatmul.mubr.f32.gmra.mrb[0].mxu0 %v192
    %v493 = vpop.f32.mrb[0].mxu0
    %v494 = vadd.f32 %v122, %v493
    %v495 = vpop.f32.mrb[0].mxu0
    %496 = vmatprep.mubr.f32.mxu0 0.0
    %497 = vmatmul.mubr.f32.gmra.mrb[0].mxu0 %v195
    %v498 = vpop.f32.mrb[0].mxu0
    %v499 = vadd.f32 %v122, %v498
    %v500 = vpop.f32.mrb[0].mxu0
    %501 = vmatprep.mubr.f32.mxu0 0.0
    %502 = vmatmul.mubr.f32.gmra.mrb[0].mxu0 %v198
    %v503 = vpop.f32.mrb[0].mxu0
    %v504 = vadd.f32 %v122, %v503
    %v505 = vpop.f32.mrb[0].mxu0
    %506 = vmatprep.mubr.f32.mxu0 0.0
    %507 = vmatmul.mubr.f32.gmra.mrb[0].mxu0 %v201
    %v508 = vpop.f32.mrb[0].mxu0
    %v509 = vadd.f32 %v122, %v508
    %v510 = vpop.f32.mrb[0].mxu0
    %511 = vmatprep.mubr.f32.mxu0 0.0
    %512 = vmatmul.mubr.f32.gmra.mrb[0].mxu0 %v204
    %v513 = vpop.f32.mrb[0].mxu0
    %v514 = vadd.f32 %v122, %v513
    %v515 = vpop.f32.mrb[0].mxu0
    %516 = vmatprep.mubr.f32.mxu0 0.0
    %517 = vmatmul.mubr.f32.gmra.mrb[0].mxu0 %v207
    %v518 = vpop.f32.mrb[0].mxu0
    %v519 = vadd.f32 %v122, %v518
    %v520 = vpop.f32.mrb[0].mxu0
    %521 = vmatprep.mubr.f32.mxu0 0.0
    %522 = vmatmul.mubr.f32.gmra.mrb[0].mxu0 %v210
    %v523 = vpop.f32.mrb[0].mxu0
    %v524 = vadd.f32 %v122, %v523
    %v525 = vpop.f32.mrb[0].mxu0
    %526 = vmatprep.mubr.f32.mxu0 0.0
    %527 = vmatmul.mubr.f32.gmra.mrb[0].mxu0 %v213
    %v528 = vpop.f32.mrb[0].mxu0
    %v529 = vadd.f32 %v122, %v528
    %v530 = vpop.f32.mrb[0].mxu0
    %531 = vmatprep.mubr.f32.mxu0 0.0
    %532 = vmatmul.mubr.f32.gmra.mrb[0].mxu0 %v216
    %v533 = vpop.f32.mrb[0].mxu0
    %v534 = vadd.f32 %v122, %v533
    %v535 = vpop.f32.mrb[0].mxu0
    %536 = vmatprep.mubr.f32.mxu0 0.0
    %537 = vmatmul.mubr.f32.gmra.mrb[0].mxu0 %v219
    %v538 = vpop.f32.mrb[0].mxu0
    %v539 = vadd.f32 %v122, %v538
    %v540 = vpop.f32.mrb[0].mxu0
    %541 = vmatprep.mubr.f32.mxu0 0.0
    %542 = vmatmul.mubr.f32.gmra.mrb[0].mxu0 %v222
    %v543 = vpop.f32.mrb[0].mxu0
    %v544 = vadd.f32 %v122, %v543
    %v545 = vpop.f32.mrb[0].mxu0
    %546 = vmatprep.mubr.f32.mxu0 0.0
    %547 = vmatmul.mubr.f32.gmra.mrb[0].mxu0 %v225
    %v548 = vpop.f32.mrb[0].mxu0
    %v549 = vadd.f32 %v122, %v548
    %v550 = vpop.f32.mrb[0].mxu0
    %551 = vmatprep.mubr.f32.mxu0 0.0
    %552 = vmatmul.mubr.f32.gmra.mrb[0].mxu0 %v228
    %v553 = vpop.f32.mrb[0].mxu0
    %v554 = vadd.f32 %v122, %v553
    %v555 = vpop.f32.mrb[0].mxu0
    %556 = vmatprep.mubr.f32.mxu0 0.0
    %557 = vmatmul.mubr.f32.gmra.mrb[0].mxu0 %v231
    %v558 = vpop.f32.mrb[0].mxu0
    %v559 = vadd.f32 %v122, %v558
    %v560 = vpop.f32.mrb[0].mxu0
    %561 = vmatprep.mubr.f32.mxu0 0.0
    %562 = vmatmul.mubr.f32.gmra.mrb[0].mxu0 %v234
    %v563 = vpop.f32.mrb[0].mxu0
    %v564 = vadd.f32 %v122, %v563
    %v565 = vpop.f32.mrb[0].mxu0
    %566 = vmatprep.mubr.f32.mxu0 0.0
    %567 = vmatmul.mubr.f32.gmra.mrb[0].mxu0 %v237
    %v568 = vpop.f32.mrb[0].mxu0
    %v569 = vadd.f32 %v122, %v568
    %v570 = vpop.f32.mrb[0].mxu0
    %571 = vmatprep.mubr.f32.mxu0 0.0
    %572 = vmatmul.mubr.f32.gmra.mrb[0].mxu0 %v240
    %v573 = vpop.f32.mrb[0].mxu0
    %v574 = vadd.f32 %v122, %v573
    %v575 = vpop.f32.mrb[0].mxu0
    %576 = vmatprep.mubr.f32.mxu0 0.0
    %577 = vmatmul.mubr.f32.gmra.mrb[0].mxu0 %v243
    %v578 = vpop.f32.mrb[0].mxu0
    %v579 = vadd.f32 %v122, %v578
    %v580 = vpop.f32.mrb[0].mxu0
    %581 = vmatprep.mubr.f32.mxu0 0.0
    %582 = vmatmul.mubr.f32.gmra.mrb[0].mxu0 %v246
    %v583 = vpop.f32.mrb[0].mxu0
    %v584 = vadd.f32 %v122, %v583
    %v585 = vpop.f32.mrb[0].mxu0
    %586 = vmatprep.mubr.f32.mxu0 0.0
    %587 = vmatmul.mubr.f32.gmra.mrb[0].mxu0 %v249
    %v588 = vpop.f32.mrb[0].mxu0
    %v589 = vadd.f32 %v122, %v588
    %v590 = vpop.f32.mrb[0].mxu0
    %591 = vmatprep.mubr.f32.mxu0 0.0
    %592 = vmatmul.mubr.f32.gmra.mrb[0].mxu0 %v252
    %v593 = vpop.f32.mrb[0].mxu0
    %v594 = vadd.f32 %v122, %v593
    %v595 = vpop.f32.mrb[0].mxu0
    %596 = vmatprep.mubr.f32.mxu0 0.0
    %597 = vmatmul.mubr.f32.gmra.mrb[0].mxu0 %v255
    %v598 = vpop.f32.mrb[0].mxu0
    %v599 = vadd.f32 %v122, %v598
    %v600 = vpop.f32.mrb[0].mxu0
    %601 = vmatprep.mubr.f32.mxu0 0.0
    %602 = vmatmul.mubr.f32.gmra.mrb[0].mxu0 %v258
    %v603 = vpop.f32.mrb[0].mxu0
    %v604 = vadd.f32 %v122, %v603
    %v605 = vpop.f32.mrb[0].mxu0
    %606 = vmatprep.mubr.f32.mxu0 0.0
    %607 = vmatmul.mubr.f32.gmra.mrb[0].mxu0 %v261
    %v608 = vpop.f32.mrb[0].mxu0
    %v609 = vadd.f32 %v122, %v608
    %v610 = vpop.f32.mrb[0].mxu0
    %611 = vmatprep.mubr.f32.mxu0 0.0
    %612 = vmatmul.mubr.f32.gmra.mrb[0].mxu0 %v264
    %v613 = vpop.f32.mrb[0].mxu0
    %v614 = vadd.f32 %v122, %v613
    %v615 = vpop.f32.mrb[0].mxu0
    %616 = vmatprep.mubr.f32.mxu0 0.0
    %617 = vmatmul.mubr.f32.gmra.mrb[0].mxu0 %v267
    %v618 = vpop.f32.mrb[0].mxu0
    %v619 = vadd.f32 %v122, %v618
    %v620 = vpop.f32.mrb[0].mxu0
    %621 = vmatprep.mubr.f32.mxu0 0.0
    %622 = vmatmul.mubr.f32.gmra.mrb[0].mxu0 %v270
    %v623 = vpop.f32.mrb[0].mxu0
    %v624 = vadd.f32 %v122, %v623
    %v625 = vpop.f32.mrb[0].mxu0
    %626 = vmatprep.mubr.f32.mxu0 0.0
    %627 = vmatmul.mubr.f32.gmra.mrb[0].mxu0 %v273
    %v628 = vpop.f32.mrb[0].mxu0
    %v629 = vadd.f32 %v122, %v628
    %v630 = vpop.f32.mrb[0].mxu0
    %631 = vmatprep.mubr.f32.mxu0 0.0
    %632 = vmatmul.mubr.f32.gmra.mrb[0].mxu0 %v276
    %v633 = vpop.f32.mrb[0].mxu0
    %v634 = vadd.f32 %v122, %v633
    %v635 = vpop.f32.mrb[0].mxu0
    %636 = vmatprep.mubr.f32.mxu0 0.0
    %637 = vmatmul.mubr.f32.gmra.mrb[0].mxu0 %v279
    %v638 = vpop.f32.mrb[0].mxu0
    %v639 = vadd.f32 %v122, %v638
    %v640 = vpop.f32.mrb[0].mxu0
    %641 = vmatprep.mubr.f32.mxu0 0.0
    %642 = vmatmul.mubr.f32.gmra.mrb[0].mxu0 %v282
    %v643 = vpop.f32.mrb[0].mxu0
    %v644 = vadd.f32 %v122, %v643
    %v645 = vpop.f32.mrb[0].mxu0
    %646 = vmatprep.mubr.f32.mxu0 0.0
    %647 = vmatmul.mubr.f32.gmra.mrb[0].mxu0 %v285
    %v648 = vpop.f32.mrb[0].mxu0
    %v649 = vadd.f32 %v122, %v648
    %v650 = vpop.f32.mrb[0].mxu0
    %651 = vmatprep.mubr.f32.mxu0 0.0
    %652 = vmatmul.mubr.f32.gmra.mrb[0].mxu0 %v288
    %v653 = vpop.f32.mrb[0].mxu0
    %v654 = vadd.f32 %v122, %v653
    %v655 = vpop.f32.mrb[0].mxu0
    %656 = vmatprep.mubr.f32.mxu0 0.0
    %657 = vmatmul.mubr.f32.gmra.mrb[0].mxu0 %v291
    %v658 = vpop.f32.mrb[0].mxu0
    %v659 = vadd.f32 %v122, %v658
    %v660 = vpop.f32.mrb[0].mxu0
    %661 = vmatprep.mubr.f32.mxu0 0.0
    %662 = vmatmul.mubr.f32.gmra.mrb[0].mxu0 %v294
    %v663 = vpop.f32.mrb[0].mxu0
    %v664 = vadd.f32 %v122, %v663
    %v665 = vpop.f32.mrb[0].mxu0
    %666 = vmatprep.mubr.f32.mxu0 0.0
    %667 = vmatmul.mubr.f32.gmra.mrb[0].mxu0 %v297
    %v668 = vpop.f32.mrb[0].mxu0
    %v669 = vadd.f32 %v122, %v668
    %v670 = vpop.f32.mrb[0].mxu0
    %671 = vmatprep.mubr.f32.mxu0 0.0
    %672 = vmatmul.mubr.f32.gmra.mrb[0].mxu0 %v300
    %v673 = vpop.f32.mrb[0].mxu0
    %v674 = vadd.f32 %v122, %v673
    %v675 = vpop.f32.mrb[0].mxu0
    %676 = vmatprep.mubr.f32.mxu0 0.0
    %677 = vmatmul.mubr.f32.gmra.mrb[0].mxu0 %v303
    %v678 = vpop.f32.mrb[0].mxu0
    %v679 = vadd.f32 %v122, %v678
    %v680 = vpop.f32.mrb[0].mxu0
    %681 = vmatprep.mubr.f32.mxu0 0.0
    %682 = vmatmul.mubr.f32.gmra.mrb[0].mxu0 %v306
    %v683 = vpop.f32.mrb[0].mxu0
    %v684 = vadd.f32 %v122, %v683
    %v685 = vpop.f32.mrb[0].mxu0
    %686 = vmatprep.mubr.f32.mxu0 0.0
    %687 = vmatmul.mubr.f32.gmra.mrb[0].mxu0 %v309
    %v688 = vpop.f32.mrb[0].mxu0
    %v689 = vadd.f32 %v122, %v688
    %v690 = vpop.f32.mrb[0].mxu0
    %691 = vmatprep.mubr.f32.mxu0 0.0
    %692 = vmatmul.mubr.f32.gmra.mrb[0].mxu0 %v312
    %v693 = vpop.f32.mrb[0].mxu0
    %v694 = vadd.f32 %v122, %v693
    %v695 = vpop.f32.mrb[0].mxu0
    %696 = vmatprep.mubr.f32.mxu0 0.0
    %697 = vmatmul.mubr.f32.gmra.mrb[0].mxu0 %v315
    %v698 = vpop.f32.mrb[0].mxu0
    %v699 = vadd.f32 %v122, %v698
    %v700 = vpop.f32.mrb[0].mxu0
    %701 = vdwg.mxu0
    %v702 = vmax.f32 %v384, 0.0
    %v703 = vmax.f32 %v389, 0.0
    %v704 = vmax.f32 %v394, 0.0
    %v705 = vmax.f32 %v399, 0.0
    %v706 = vmax.f32 %v404, 0.0
    %v707 = vmax.f32 %v409, 0.0
    %v708 = vmax.f32 %v414, 0.0
    %v709 = vmax.f32 %v419, 0.0
    %v710 = vmax.f32 %v424, 0.0
    %v711 = vmax.f32 %v429, 0.0
    %v712 = vmax.f32 %v434, 0.0
    %v713 = vmax.f32 %v439, 0.0
    %v714 = vmax.f32 %v444, 0.0
    %v715 = vmax.f32 %v449, 0.0
    %v716 = vmax.f32 %v454, 0.0
    %v717 = vmax.f32 %v459, 0.0
    %v718 = vmax.f32 %v464, 0.0
    %v719 = vmax.f32 %v469, 0.0
    %v720 = vmax.f32 %v474, 0.0
    %v721 = vmax.f32 %v479, 0.0
    %v722 = vmax.f32 %v484, 0.0
    %v723 = vmax.f32 %v489, 0.0
    %v724 = vmax.f32 %v494, 0.0
    %v725 = vmax.f32 %v499, 0.0
    %v726 = vmax.f32 %v504, 0.0
    %v727 = vmax.f32 %v509, 0.0
    %v728 = vmax.f32 %v514, 0.0
    %v729 = vmax.f32 %v519, 0.0
    %v730 = vmax.f32 %v524, 0.0
    %v731 = vmax.f32 %v529, 0.0
    %v732 = vmax.f32 %v534, 0.0
    %v733 = vmax.f32 %v539, 0.0
    %v734 = vmax.f32 %v544, 0.0
    %v735 = vmax.f32 %v549, 0.0
    %v736 = vmax.f32 %v554, 0.0
    %v737 = vmax.f32 %v559, 0.0
    %v738 = vmax.f32 %v564, 0.0
    %v739 = vmax.f32 %v569, 0.0
    %v740 = vmax.f32 %v574, 0.0
    %v741 = vmax.f32 %v579, 0.0
    %v742 = vmax.f32 %v584, 0.0
    %v743 = vmax.f32 %v589, 0.0
    %v744 = vmax.f32 %v594, 0.0
    %v745 = vmax.f32 %v599, 0.0
    %v746 = vmax.f32 %v604, 0.0
    %v747 = vmax.f32 %v609, 0.0
    %v748 = vmax.f32 %v614, 0.0
    %v749 = vmax.f32 %v619, 0.0
    %v750 = vmax.f32 %v624, 0.0
    %v751 = vmax.f32 %v629, 0.0
    %v752 = vmax.f32 %v634, 0.0
    %v753 = vmax.f32 %v639, 0.0
    %v754 = vmax.f32 %v644, 0.0
    %v755 = vmax.f32 %v649, 0.0
    %v756 = vmax.f32 %v654, 0.0
    %v757 = vmax.f32 %v659, 0.0
    %v758 = vmax.f32 %v664, 0.0
    %v759 = vmax.f32 %v669, 0.0
    %v760 = vmax.f32 %v674, 0.0
    %v761 = vmax.f32 %v679, 0.0
    %v762 = vmax.f32 %v684, 0.0
    %v763 = vmax.f32 %v689, 0.0
    %v764 = vmax.f32 %v694, 0.0
    %v765 = vmax.f32 %v699, 0.0
    %766 = vst [vmem:[#allocation8] sm:$0xff] %v702
    %767 = vst [vmem:[#allocation8 + $0x8] sm:$0xff] %v703
    %768 = vst [vmem:[#allocation8 + $0x10] sm:$0xff] %v704
    %769 = vst [vmem:[#allocation8 + $0x18] sm:$0xff] %v705
    %770 = vst [vmem:[#allocation8 + $0x20] sm:$0xff] %v706
    %771 = vst [vmem:[#allocation8 + $0x28] sm:$0xff] %v707
    %772 = vst [vmem:[#allocation8 + $0x30] sm:$0xff] %v708
    %773 = vst [vmem:[#allocation8 + $0x38] sm:$0xff] %v709
    %774 = vst [vmem:[#allocation8 + $0x40] sm:$0xff] %v710
    %775 = vst [vmem:[#allocation8 + $0x48] sm:$0xff] %v711
    %776 = vst [vmem:[#allocation8 + $0x50] sm:$0xff] %v712
    %777 = vst [vmem:[#allocation8 + $0x58] sm:$0xff] %v713
    %778 = vst [vmem:[#allocation8 + $0x60] sm:$0xff] %v714
    %779 = vst [vmem:[#allocation8 + $0x68] sm:$0xff] %v715
    %780 = vst [vmem:[#allocation8 + $0x70] sm:$0xff] %v716
    %781 = vst [vmem:[#allocation8 + $0x78] sm:$0xff] %v717
    %782 = vst [vmem:[#allocation8 + $0x80] sm:$0xff] %v718
    %783 = vst [vmem:[#allocation8 + $0x88] sm:$0xff] %v719
    %784 = vst [vmem:[#allocation8 + $0x90] sm:$0xff] %v720
    %785 = vst [vmem:[#allocation8 + $0x98] sm:$0xff] %v721
    %786 = vst [vmem:[#allocation8 + $0xa0] sm:$0xff] %v722
    %787 = vst [vmem:[#allocation8 + $0xa8] sm:$0xff] %v723
    %788 = vst [vmem:[#allocation8 + $0xb0] sm:$0xff] %v724
    %789 = vst [vmem:[#allocation8 + $0xb8] sm:$0xff] %v725
    %790 = vst [vmem:[#allocation8 + $0xc0] sm:$0xff] %v726
    %791 = vst [vmem:[#allocation8 + $0xc8] sm:$0xff] %v727
    %792 = vst [vmem:[#allocation8 + $0xd0] sm:$0xff] %v728
    %793 = vst [vmem:[#allocation8 + $0xd8] sm:$0xff] %v729
    %794 = vst [vmem:[#allocation8 + $0xe0] sm:$0xff] %v730
    %795 = vst [vmem:[#allocation8 + $0xe8] sm:$0xff] %v731
    %796 = vst [vmem:[#allocation8 + $0xf0] sm:$0xff] %v732
    %797 = vst [vmem:[#allocation8 + $0xf8] sm:$0xff] %v733
    %798 = vst [vmem:[#allocation8 + $0x100] sm:$0xff] %v734
    %799 = vst [vmem:[#allocation8 + $0x108] sm:$0xff] %v735
    %800 = vst [vmem:[#allocation8 + $0x110] sm:$0xff] %v736
    %801 = vst [vmem:[#allocation8 + $0x118] sm:$0xff] %v737
    %802 = vst [vmem:[#allocation8 + $0x120] sm:$0xff] %v738
    %803 = vst [vmem:[#allocation8 + $0x128] sm:$0xff] %v739
    %804 = vst [vmem:[#allocation8 + $0x130] sm:$0xff] %v740
    %805 = vst [vmem:[#allocation8 + $0x138] sm:$0xff] %v741
    %806 = vst [vmem:[#allocation8 + $0x140] sm:$0xff] %v742
    %807 = vst [vmem:[#allocation8 + $0x148] sm:$0xff] %v743
    %808 = vst [vmem:[#allocation8 + $0x150] sm:$0xff] %v744
    %809 = vst [vmem:[#allocation8 + $0x158] sm:$0xff] %v745
    %810 = vst [vmem:[#allocation8 + $0x160] sm:$0xff] %v746
    %811 = vst [vmem:[#allocation8 + $0x168] sm:$0xff] %v747
    %812 = vst [vmem:[#allocation8 + $0x170] sm:$0xff] %v748
    %813 = vst [vmem:[#allocation8 + $0x178] sm:$0xff] %v749
    %814 = vst [vmem:[#allocation8 + $0x180] sm:$0xff] %v750
    %815 = vst [vmem:[#allocation8 + $0x188] sm:$0xff] %v751
    %816 = vst [vmem:[#allocation8 + $0x190] sm:$0xff] %v752
    %817 = vst [vmem:[#allocation8 + $0x198] sm:$0xff] %v753
    %818 = vst [vmem:[#allocation8 + $0x1a0] sm:$0xff] %v754
    %819 = vst [vmem:[#allocation8 + $0x1a8] sm:$0xff] %v755
    %820 = vst [vmem:[#allocation8 + $0x1b0] sm:$0xff] %v756
    %821 = vst [vmem:[#allocation8 + $0x1b8] sm:$0xff] %v757
    %822 = vst [vmem:[#allocation8 + $0x1c0] sm:$0xff] %v758
    %823 = vst [vmem:[#allocation8 + $0x1c8] sm:$0xff] %v759
    %824 = vst [vmem:[#allocation8 + $0x1d0] sm:$0xff] %v760
    %825 = vst [vmem:[#allocation8 + $0x1d8] sm:$0xff] %v761
    %826 = vst [vmem:[#allocation8 + $0x1e0] sm:$0xff] %v762
    %827 = vst [vmem:[#allocation8 + $0x1e8] sm:$0xff] %v763
    %828 = vst [vmem:[#allocation8 + $0x1f0] sm:$0xff] %v764
    %829 = vst [vmem:[#allocation8 + $0x1f8] sm:$0xff] %v765
    // Predicated region
    $region26: #{tpu_custom_call.1} parent=1 // pred_check
      _
    $region27: #{tpu_custom_call.1} parent=1 // pred_check_branch
      %831 = sbr.rel (0) target = $region29
    $region28: #{tpu_custom_call.1} parent=1 // pred_region
      %s833 = ssub.s32 8192, 8192
      %834 = vsyncadd [#allocation4], %s833
      %s835 = sshll.u32 [#allocation8], 4
      %s836 = int_to_ptr.vmem [resolvable:$true] %s835
      %841 = dma.vmem_to_hbm [thread:$0]  %s836, 8192, %s3, [#allocation4], 128, 128, 8
    $region29: #{tpu_custom_call.1} parent=1 // pred_fallthru
      _
    // Predicated region
    $region30: #{tpu_custom_call.1} parent=1 // pred_check
      _
    $region31: #{tpu_custom_call.1} parent=1 // pred_check_branch
      %843 = sbr.rel (0) target = $region33
    $region32: #{tpu_custom_call.1} parent=1 // pred_region
      %844 = dma.done [#allocation4], 8192
    $region33: #{tpu_custom_call.1} parent=1 // pred_fallthru
      _
    %845 = vsyncpa [#allocation3], 1
    %846 = vsyncpa [#allocation6], 1
    %847 = vsyncpa [#allocation4], 1

</llo_original>
